<compile_context>
chip_gen: v7x
topology: tpu7x:2x2x1
jax: 0.10.0
libtpu: 0.0.40
codegen_flags: <defaults>
</compile_context>

<pallas_src>
import functools

import jax
import jax.numpy as jnp
from jax.experimental import pallas as pl
from jax.experimental.pallas import tpu as pltpu


# ----------------------------- tiling constants ------------------------------

_LANE = 1024                       # lane-dense tile width (multiple of 128)
_BLOCK_ROWS = 512                  # 512 * 1024 * 4 B = 2 MiB f32 per block
_SINGLE_PASS_BYTES = 4 << 20       # slab <= 4 MiB -> fused single-pass kernel
_VMEM_LIMIT = 32 << 20             # safe scoped-VMEM limit on v5e/v6e/v7x


def _round_up(x: int, m: int) -> int:
    return -(-x // m) * m


# ----------------------------- Pallas kernels --------------------------------

def _normalize_onepass_kernel(x_ref, o_ref):
    """Fused global absmax + scale for slabs that fit VMEM (one read, one write)."""
    x = x_ref[...].astype(jnp.float32)
    m = jnp.maximum(jnp.max(jnp.abs(x)), 1e-8)     # clamp(min=1e-8)
    o_ref[...] = (x * (1.0 / m)).astype(o_ref.dtype)


def _inv_absmax_kernel(x_ref, inv_ref, acc_sm):
    """Pass 1 (tiled): running max(|x|) in SMEM scratch; emit 1/max at the end."""
    i = pl.program_id(0)

    @pl.when(i == 0)
    def _():
        acc_sm[0] = jnp.float32(1e-8)              # clamp(min=1e-8) baked into init

    tile_max = jnp.max(jnp.abs(x_ref[...].astype(jnp.float32)))
    acc_sm[0] = jnp.maximum(acc_sm[0], tile_max)

    @pl.when(i == pl.num_programs(0) - 1)
    def _():
        inv_ref[0] = 1.0 / acc_sm[0]


def _scale_kernel(inv_ref, x_ref, o_ref):
    """Pass 2 (tiled): x * (1/absmax); the scalar reciprocal comes in via SMEM."""
    o_ref[...] = (x_ref[...].astype(jnp.float32) * inv_ref[0]).astype(o_ref.dtype)


def _codes_kernel(seed_ref, o_ref, *, mask, total_cols, col_tile):
    """Mock-tokenizer codes: splitmix32-style hash of (row, col, seed), masked
    to [0, codebook_size). Uses only jnp integer ops (portable lowering)."""
    j = pl.program_id(0)
    r = jax.lax.broadcasted_iota(jnp.int32, o_ref.shape, 0).astype(jnp.uint32)
    c = (jax.lax.broadcasted_iota(jnp.int32, o_ref.shape, 1)
         + j * col_tile).astype(jnp.uint32)
    x = r * jnp.uint32(total_cols) + c
    x = x + seed_ref[0].astype(jnp.uint32) * jnp.uint32(0x9E3779B9)
    x = (x ^ (x >> 16)) * jnp.uint32(0x7FEB352D)
    x = (x ^ (x >> 15)) * jnp.uint32(0x846CA68B)
    x = x ^ (x >> 16)
    o_ref[...] = (x & jnp.uint32(mask)).astype(jnp.int32)


# ----------------------------- kernel wrappers --------------------------------

def pallas_normalize(audio: jax.Array) -> jax.Array:
    """audio / clamp(max(|audio|), 1e-8) over the whole tensor, via Pallas."""
    B, C, T = audio.shape
    dtype = audio.dtype
    itemsize = jnp.dtype(dtype).itemsize
    N = B * C * T

    # Flatten to a lane/sublane-dense 2-D slab: (rows_p, _LANE), rows_p % 8 == 0.
    flat = audio.reshape(-1)
    rows = _round_up(N, _LANE) // _LANE
    single_pass = rows * _LANE * itemsize <= _SINGLE_PASS_BYTES
    if single_pass:
        rows_p = max(8, _round_up(rows, 8))
        blk = rows_p
    else:
        blk = _BLOCK_ROWS
        rows_p = _round_up(rows, blk)
    padded = rows_p * _LANE
    if padded != N:
        flat = jnp.pad(flat, (0, padded - N))      # zero padding: |0| never wins the max
    x2 = flat.reshape(rows_p, _LANE)

    if single_pass:
        out2 = pl.pallas_call(
            _normalize_onepass_kernel,
            out_shape=jax.ShapeDtypeStruct((rows_p, _LANE), dtype),
            in_specs=[pl.BlockSpec(memory_space=pltpu.MemorySpace.VMEM)],
            out_specs=pl.BlockSpec(memory_space=pltpu.MemorySpace.VMEM),
            compiler_params=pltpu.CompilerParams(vmem_limit_bytes=_VMEM_LIMIT),
        )(x2)
    else:
        n_tiles = rows_p // blk

        # Pass 1: global absmax -> reciprocal, accumulator kept in SMEM scratch.
        # TODO(synk): split this reduction across the two v7x TensorCores
        # (leading parallel axis with two partial maxes combined in the wrapper).
        inv = pl.pallas_call(
            _inv_absmax_kernel,
            out_shape=jax.ShapeDtypeStruct((1,), jnp.float32),
            grid=(n_tiles,),
            in_specs=[pl.BlockSpec((blk, _LANE), lambda i: (i, 0))],
            out_specs=pl.BlockSpec(memory_space=pltpu.MemorySpace.SMEM),
            scratch_shapes=[pltpu.SMEM((1,), jnp.float32)],
            compiler_params=pltpu.CompilerParams(
                dimension_semantics=("arbitrary",),
                vmem_limit_bytes=_VMEM_LIMIT),
        )(x2)

        # Pass 2: scale by the precomputed reciprocal (SMEM scalar input).
        out2 = pl.pallas_call(
            _scale_kernel,
            out_shape=jax.ShapeDtypeStruct((rows_p, _LANE), dtype),
            grid=(n_tiles,),
            in_specs=[
                pl.BlockSpec(memory_space=pltpu.MemorySpace.SMEM),
                pl.BlockSpec((blk, _LANE), lambda i: (i, 0)),
            ],
            out_specs=pl.BlockSpec((blk, _LANE), lambda i: (i, 0)),
            compiler_params=pltpu.CompilerParams(
                dimension_semantics=("parallel",),
                vmem_limit_bytes=_VMEM_LIMIT),
        )(inv, x2)

    return out2.reshape(-1)[:N].reshape(B, C, T)


def pallas_random_codes(seed: int, shape, codebook_size: int) -> jax.Array:
    """Mock codes in [0, codebook_size), deterministic per seed (torch.randint stand-in)."""
    assert codebook_size & (codebook_size - 1) == 0, "codebook_size must be a power of 2"
    B, Q, F = shape
    rows = B * Q
    rows_p = max(8, _round_up(rows, 8))            # sublane-dense
    cols_min = max(128, _round_up(F, 128))         # lane-dense (unmasked vst)

    # Tile the frame axis so one block stays around <= 4 MiB (matters for long audio).
    max_cols = max(128, ((4 << 20) // (4 * rows_p)) // 128 * 128)
    col_tile = min(cols_min, max_cols)
    cols_p = _round_up(cols_min, col_tile)
    grid = (cols_p // col_tile,)

    seed_arr = jnp.asarray([seed], dtype=jnp.int32)
    out2 = pl.pallas_call(
        functools.partial(_codes_kernel, mask=codebook_size - 1,
                          total_cols=cols_p, col_tile=col_tile),
        out_shape=jax.ShapeDtypeStruct((rows_p, cols_p), jnp.int32),
        grid=grid,
        in_specs=[pl.BlockSpec(memory_space=pltpu.MemorySpace.SMEM)],
        out_specs=pl.BlockSpec((rows_p, col_tile), lambda j: (0, j)),
        compiler_params=pltpu.CompilerParams(
            dimension_semantics=("parallel",),
            vmem_limit_bytes=_VMEM_LIMIT),
    )(seed_arr)
    return out2[:rows, :F].reshape(B, Q, F)


# ----------------------------- module ports -----------------------------------

class EnCodecTokenizerPallas:
    """Mock-path EnCodecTokenizer (EnCodec package unavailable in the reference)."""

    def __init__(self, model_name="facebook/encodec_24khz", sample_rate=24000,
                 bandwidth=6.0, normalize=True, device=None, seed=0):
        self.model_name = model_name
        self.sample_rate = sample_rate
        self.bandwidth = bandwidth
        self.normalize = normalize
        self.num_quantizers = 8        # mock path
        self.codebook_size = 1024      # mock path
        self.frame_rate = 75           # mock path
        self.hop_length = int(self.sample_rate / self.frame_rate)
        self.seed = seed

    def preprocess_audio(self, audio, original_sample_rate=None):
        # TODO(synk): resampling (convert_audio) has no Pallas path; inputs must
        # already be at self.sample_rate (matches the mock branch of the module).
        if audio.ndim == 1:
            audio = audio[None, None, :]
        elif audio.ndim == 2:
            audio = audio[None, :, :]
        assert audio.ndim == 3, "expected audio of shape (batch, channels, time)"
        if self.normalize:
            audio = pallas_normalize(audio)
        return audio

    def encode(self, audio, sample_rate=None, *, _preprocessed=False):
        if not _preprocessed:
            audio = self.preprocess_audio(audio, sample_rate)
        batch_size = audio.shape[0]
        num_frames = int(audio.shape[-1] // self.hop_length)
        codes = pallas_random_codes(
            self.seed, (batch_size, self.num_quantizers, num_frames), self.codebook_size)
        scales = None
        return codes, scales

    def forward(self, audio=None, tokens=None, sample_rate=None, mode="encode"):
        if mode == "encode":
            if audio is None:
                raise ValueError("Audio must be provided for encoding")
            return self.encode(audio, sample_rate)
        raise ValueError(f"Unsupported mode for mock Pallas tokenizer: {mode}")


class MultiResolutionTokenizerPallas:
    """Multi-resolution audio tokenizer: one mock EnCodec tokenizer per config."""

    def __init__(self, model_configs, fusion_method="hierarchical"):
        self.fusion_method = fusion_method
        self.tokenizers = [
            EnCodecTokenizerPallas(seed=1000 + i, **cfg)
            for i, cfg in enumerate(model_configs)
        ]
        self.num_tokenizers = len(self.tokenizers)

    def encode_multi_resolution(self, audio, sample_rate=None):
        # Hoist the (identical, global) normalization out of the per-tokenizer
        # loop: normalize once, reuse for every tokenizer that wants it.
        if audio.ndim == 1:
            audio = audio[None, None, :]
        elif audio.ndim == 2:
            audio = audio[None, :, :]
        normalized = None
        results = []
        for tokenizer in self.tokenizers:
            if tokenizer.normalize:
                if normalized is None:
                    normalized = pallas_normalize(audio)
                prepped = normalized
            else:
                prepped = audio
            codes, scales = tokenizer.encode(prepped, sample_rate, _preprocessed=True)
            results.append((codes, scales))
        return results

    def forward(self, audio=None, multi_codes=None, sample_rate=None, mode="encode"):
        if mode == "encode":
            return self.encode_multi_resolution(audio, sample_rate)
        raise ValueError(f"Unsupported mode for mock Pallas tokenizer: {mode}")


# --------------------------------- main ----------------------------------------

if __name__ == "__main__":
    key = jax.random.PRNGKey(0)
    # (batch=2, channels=1, time=6400) audio in NCW layout.
    audio = jax.random.normal(key, (2, 1, 6400), dtype=jnp.float32)

    model_configs = [
        {"model_name": "facebook/encodec_24khz", "sample_rate": 24000,
         "bandwidth": 6.0, "normalize": True},
        {"model_name": "facebook/encodec_48khz", "sample_rate": 48000,
         "bandwidth": 12.0, "normalize": True},
    ]
    tokenizer = MultiResolutionTokenizerPallas(model_configs)

    results = tokenizer.forward(audio=audio, sample_rate=None, mode="encode")
    for codes, _ in results:
        jax.block_until_ready(codes)

    # --- correctness: normalization (single-pass fused path) ---
    ref_norm = audio / jnp.clip(jnp.max(jnp.abs(audio)), 1e-8, None)
    got_norm = jax.block_until_ready(pallas_normalize(audio))
    assert got_norm.shape == audio.shape and got_norm.dtype == audio.dtype
    assert jnp.allclose(got_norm, ref_norm, atol=1e-6, rtol=1e-6), "normalization mismatch"

    # --- correctness: normalization (tiled 2-pass path, > single-pass budget) ---
    big = jax.random.normal(jax.random.PRNGKey(1), (2, 1, 786432), dtype=jnp.float32)
    ref_big = big / jnp.clip(jnp.max(jnp.abs(big)), 1e-8, None)
    got_big = jax.block_until_ready(pallas_normalize(big))
    assert jnp.allclose(got_big, ref_big, atol=1e-6, rtol=1e-6), "tiled normalization mismatch"

    # --- correctness: mock codes ---
    expected_frames = [6400 // int(24000 / 75), 6400 // int(48000 / 75)]  # [20, 10]
    for (codes, scales), nf in zip(results, expected_frames):
        assert codes.shape == (2, 8, nf), codes.shape
        assert codes.dtype == jnp.int32
        assert int(jnp.min(codes)) >= 0 and int(jnp.max(codes)) < 1024
        assert scales is None

    print("KERNEL_OK")
</pallas_src>

<mosaic_0001>
module attributes {stable_mosaic.version = 11 : i64} {
  func.func @_normalize_onepass_kernel(%arg0: memref<16x1024xf32, #tpu.memory_space<vmem>>, %arg1: memref<16x1024xf32, #tpu.memory_space<vmem>>) attributes {dimension_semantics = [], scalar_prefetch = 0 : i64, scratch_operands = 0 : i64, tpu.core_type = #tpu.core_type<tc>} {
    %c0 = arith.constant 0 : index
    %c0_0 = arith.constant 0 : index
    %0 = vector.load %arg0[%c0, %c0_0] : memref<16x1024xf32, #tpu.memory_space<vmem>>, vector<16x1024xf32>
    %1 = math.absf %0 : vector<16x1024xf32>
    %2 = vector.shape_cast %1 : vector<16x1024xf32> to vector<1x16x1024xf32>
    %cst = arith.constant dense<0xFF800000> : vector<1xf32>
    %3 = vector.multi_reduction <maximumf>, %2, %cst [1, 2] : vector<1x16x1024xf32> to vector<1xf32>
    %4 = vector.shape_cast %3 : vector<1xf32> to vector<1x1x1xf32>
    %5 = vector.extract %4[0, 0, 0] : f32 from vector<1x1x1xf32>
    %cst_1 = arith.constant 9.99999993E-9 : f32
    %6 = arith.maximumf %5, %cst_1 : f32
    %cst_2 = arith.constant 1.000000e+00 : f32
    %7 = arith.divf %cst_2, %6 : f32
    %8 = vector.broadcast %7 : f32 to vector<16x1024xf32>
    %9 = arith.mulf %0, %8 : vector<16x1024xf32>
    %c0_3 = arith.constant 0 : index
    %c0_4 = arith.constant 0 : index
    %10 = vector.load %arg1[%c0_3, %c0_4] : memref<16x1024xf32, #tpu.memory_space<vmem>>, vector<16x1024xf32>
    tpu.vector_store %arg1[%c0_3, %c0_4], %9 {strides = array<i32>} : memref<16x1024xf32, #tpu.memory_space<vmem>>, vector<16x1024xf32>,
    return
  }
}

</mosaic_0001>

<llo_original>
// kernel: tpu_custom_call.1
$region0: #{tpu_custom_call.1}
  #allocation0 [shape = 'u32[]', space=smem, size = 0x4, offset = 0x4, fixed_abs, tag = 'smem constant byte address 0x4 - core index']
  #allocation1 [shape = 'u32[144,128]{1,0:T(1,128)}', space=vmem, size = 0x12000, scoped, tag = 'internal scratch']
  %s0 = inlined_call_operand.hbm [shape: f32[16,1024], index: 0, kind: input, shape index: {}]
  %s1 = inlined_call_operand.hbm [shape: f32[16,1024], index: 1, kind: output, shape index: {}]
  %s2 = sld [smem:[#allocation0]]
  $region18: #{tpu_custom_call.1} parent=0
    _
  %s4 = ssub.s32 1, %s2
  %s5 = scalar_select 0, %s4, %s2
  $region1: #{tpu_custom_call.1} parent=0
    #allocation2 [shape = 'u8[65536]{0}', space=vmem, size = 0x10000, scoped, tag = 'input window, operand 0, single buffered']
    #allocation3 [shape = 's32[1]{0}', space=sflag, size = 0x4, scoped, tag = 'scoped memory for tpu_custom_call.1']
    #allocation4 [shape = 's32[1]{0}', space=sflag, size = 0x4, scoped, tag = 'scoped memory for tpu_custom_call.1']
    #allocation5 [shape = 'u8[65536]{0}', space=vmem, size = 0x10000, scoped, tag = 'output window, operand 0, single buffered']
    %6 = vsyncpa [#allocation3], 0
    %7 = vsyncpa [#allocation4], 0
    // Predicated region
    $region2: #{tpu_custom_call.1} parent=1 // pred_check
      _
    $region3: #{tpu_custom_call.1} parent=1 // pred_check_branch
      %9 = sbr.rel (0) target = $region5
    $region4: #{tpu_custom_call.1} parent=1 // pred_region
      %s11 = ssub.s32 2048, 2048
      %12 = vsyncadd [#allocation3], %s11
      %s13 = sshll.u32 [#allocation2], 4
      %s14 = int_to_ptr.vmem [resolvable:$true] %s13
      %19 = dma.hbm_to_vmem [thread:$0]  %s0, 2048, %s14, [#allocation3], 1024, 1024, 64
    $region5: #{tpu_custom_call.1} parent=1 // pred_fallthru
      _
    // Predicated region
    $region6: #{tpu_custom_call.1} parent=1 // pred_check
      _
    $region7: #{tpu_custom_call.1} parent=1 // pred_check_branch
      %21 = sbr.rel (0) target = $region9
    $region8: #{tpu_custom_call.1} parent=1 // pred_region
      %22 = dma.done [#allocation3], 2048
    $region9: #{tpu_custom_call.1} parent=1 // pred_fallthru
      _
    %v23 = vld [vmem:[#allocation2] sm:$0xff]
    %v24 = vld [vmem:[#allocation2 + $0x8] sm:$0xff]
    %v25 = vld [vmem:[#allocation2 + $0x10] sm:$0xff]
    %v26 = vld [vmem:[#allocation2 + $0x18] sm:$0xff]
    %v27 = vld [vmem:[#allocation2 + $0x20] sm:$0xff]
    %v28 = vld [vmem:[#allocation2 + $0x28] sm:$0xff]
    %v29 = vld [vmem:[#allocation2 + $0x30] sm:$0xff]
    %v30 = vld [vmem:[#allocation2 + $0x38] sm:$0xff]
    %v31 = vld [vmem:[#allocation2 + $0x40] sm:$0xff]
    %v32 = vld [vmem:[#allocation2 + $0x48] sm:$0xff]
    %v33 = vld [vmem:[#allocation2 + $0x50] sm:$0xff]
    %v34 = vld [vmem:[#allocation2 + $0x58] sm:$0xff]
    %v35 = vld [vmem:[#allocation2 + $0x60] sm:$0xff]
    %v36 = vld [vmem:[#allocation2 + $0x68] sm:$0xff]
    %v37 = vld [vmem:[#allocation2 + $0x70] sm:$0xff]
    %v38 = vld [vmem:[#allocation2 + $0x78] sm:$0xff]
    %v39 = vand.u32 2147483647, %v23
    %v40 = vand.u32 2147483647, %v24
    %v41 = vand.u32 2147483647, %v25
    %v42 = vand.u32 2147483647, %v26
    %v43 = vand.u32 2147483647, %v27
    %v44 = vand.u32 2147483647, %v28
    %v45 = vand.u32 2147483647, %v29
    %v46 = vand.u32 2147483647, %v30
    %v47 = vand.u32 2147483647, %v31
    %v48 = vand.u32 2147483647, %v32
    %v49 = vand.u32 2147483647, %v33
    %v50 = vand.u32 2147483647, %v34
    %v51 = vand.u32 2147483647, %v35
    %v52 = vand.u32 2147483647, %v36
    %v53 = vand.u32 2147483647, %v37
    %v54 = vand.u32 2147483647, %v38
    %v55 = vmax.f32 %v39, %v43
    %v56 = vmax.f32 %v40, %v44
    %v57 = vmax.f32 %v41, %v45
    %v58 = vmax.f32 %v42, %v46
    %v59 = vmax.f32 %v55, %v47
    %v60 = vmax.f32 %v56, %v48
    %v61 = vmax.f32 %v57, %v49
    %v62 = vmax.f32 %v58, %v50
    %v63 = vmax.f32 %v59, %v51
    %v64 = vmax.f32 %v60, %v52
    %v65 = vmax.f32 %v61, %v53
    %v66 = vmax.f32 %v62, %v54
    %v67 = vmax.f32 %v63, %v64
    %v68 = vmax.f32 %v65, %v66
    %v69 = vmax.f32 %v67, %v68
    %70 = vmax.xlane.f32.xlu0 %v69
    %v71 = vpop.xlane.xlu0 %70
    %v72 = vrot.slane %v71, 4
    %v73 = vmax.f32 %v71, %v72
    %v74 = vrot.slane %v73, 2
    %v75 = vmax.f32 %v73, %v74
    %v76 = vrot.slane %v75, 1
    %v77 = vmax.f32 %v75, %v76
    %s78 = vtos %v77
    %s79 = smax.f32 %s78, 1e-08
    %v80 = vstv %s79
    %v81 = vrcp.pop %v80
    %s82 = vtos %v81
    %v83 = vstv %s82
    %v84 = vmul.f32 %v23, %v83
    %v85 = vmul.f32 %v24, %v83
    %v86 = vmul.f32 %v25, %v83
    %v87 = vmul.f32 %v26, %v83
    %v88 = vmul.f32 %v27, %v83
    %v89 = vmul.f32 %v28, %v83
    %v90 = vmul.f32 %v29, %v83
    %v91 = vmul.f32 %v30, %v83
    %v92 = vmul.f32 %v31, %v83
    %v93 = vmul.f32 %v32, %v83
    %v94 = vmul.f32 %v33, %v83
    %v95 = vmul.f32 %v34, %v83
    %v96 = vmul.f32 %v35, %v83
    %v97 = vmul.f32 %v36, %v83
    %v98 = vmul.f32 %v37, %v83
    %v99 = vmul.f32 %v38, %v83
    %100 = vst [vmem:[#allocation5] sm:$0xff] %v84
    %101 = vst [vmem:[#allocation5 + $0x8] sm:$0xff] %v85
    %102 = vst [vmem:[#allocation5 + $0x10] sm:$0xff] %v86
    %103 = vst [vmem:[#allocation5 + $0x18] sm:$0xff] %v87
    %104 = vst [vmem:[#allocation5 + $0x20] sm:$0xff] %v88
    %105 = vst [vmem:[#allocation5 + $0x28] sm:$0xff] %v89
    %106 = vst [vmem:[#allocation5 + $0x30] sm:$0xff] %v90
    %107 = vst [vmem:[#allocation5 + $0x38] sm:$0xff] %v91
    %108 = vst [vmem:[#allocation5 + $0x40] sm:$0xff] %v92
    %109 = vst [vmem:[#allocation5 + $0x48] sm:$0xff] %v93
    %110 = vst [vmem:[#allocation5 + $0x50] sm:$0xff] %v94
    %111 = vst [vmem:[#allocation5 + $0x58] sm:$0xff] %v95
    %112 = vst [vmem:[#allocation5 + $0x60] sm:$0xff] %v96
    %113 = vst [vmem:[#allocation5 + $0x68] sm:$0xff] %v97
    %114 = vst [vmem:[#allocation5 + $0x70] sm:$0xff] %v98
    %115 = vst [vmem:[#allocation5 + $0x78] sm:$0xff] %v99
    // Predicated region
    $region10: #{tpu_custom_call.1} parent=1 // pred_check
      _
    $region11: #{tpu_custom_call.1} parent=1 // pred_check_branch
      %117 = sbr.rel (0) target = $region13
    $region12: #{tpu_custom_call.1} parent=1 // pred_region
      %s119 = ssub.s32 2048, 2048
      %120 = vsyncadd [#allocation4], %s119
      %s121 = sshll.u32 [#allocation5], 4
      %s122 = int_to_ptr.vmem [resolvable:$true] %s121
      %127 = dma.vmem_to_hbm [thread:$0]  %s122, 2048, %s1, [#allocation4], 1024, 1024, 64
    $region13: #{tpu_custom_call.1} parent=1 // pred_fallthru
      _
    // Predicated region
    $region14: #{tpu_custom_call.1} parent=1 // pred_check
      _
    $region15: #{tpu_custom_call.1} parent=1 // pred_check_branch
      %129 = sbr.rel (0) target = $region17
    $region16: #{tpu_custom_call.1} parent=1 // pred_region
      %130 = dma.done [#allocation4], 2048
    $region17: #{tpu_custom_call.1} parent=1 // pred_fallthru
      _
    %131 = vsyncpa [#allocation3], 1
    %132 = vsyncpa [#allocation4], 1

</llo_original>
